<compile_context>
chip_gen: v7x
topology: tpu7x:2x2x1
jax: 0.10.0
libtpu: 0.0.40
codegen_flags: <defaults>
</compile_context>

<pallas_src>
import functools

import jax
import jax.numpy as jnp
from jax import lax
from jax.experimental import pallas as pl
from jax.experimental.pallas import tpu as pltpu

_LANE = 128
_SUBLANE = 8


def _policy_kernel(x_ref, w1_ref, b1_ref, w2t_ref, b2_ref, o_ref, *, action_bound):
    # Cast the activation tile in-kernel (no wrapper-side HBM pass over states;
    # a VPU cast is free in a memory-bound kernel).
    x = x_ref[...].astype(w1_ref.dtype)

    # fc1: (TB, S) @ (S, H_pad) -> (TB, H_pad), f32 accumulation; bias + ReLU in f32.
    h = jnp.dot(x, w1_ref[...], preferred_element_type=jnp.float32)
    h = jnp.maximum(h + b1_ref[...], 0.0)

    # fc2 in transposed form: (A, H_pad) x (TB, H_pad), contracting on H -> (A, TB).
    # Batch rides on lanes, so the store is lane-dense and only A real sublanes
    # of output are written (no 128-wide padded slab).
    y = lax.dot_general(
        w2t_ref[...], h.astype(w2t_ref.dtype),
        dimension_numbers=(((1,), (1,)), ((), ())),
        preferred_element_type=jnp.float32,
    )
    y = y + b2_ref[...]                       # b2 is (A, 1), broadcast over lanes
    o_ref[...] = (jnp.tanh(y) * action_bound).astype(o_ref.dtype)


def prepare_policy_params(w1, b1, w2, b2, *, weight_dtype=jnp.float32):
    """Pad / pre-transpose the parameters once per parameter set.

    w1: (S, H), b1: (H,), w2: (H, A), b2: (A,)
    Returns (w1_p (S, H_pad), b1_p (1, H_pad), w2t_p (A, H_pad), b2_p (A, 1)).
    Zero padding of the hidden dim is semantics-preserving: padded fc1 columns
    are relu(0 + 0) = 0 and meet zero rows of w2.
    """
    S, H = w1.shape
    H2, A = w2.shape
    assert H2 == H and b1.shape == (H,) and b2.shape == (A,)
    H_pad = _LANE * pl.cdiv(H, _LANE)
    wdt = jnp.dtype(weight_dtype)

    w1_p = jnp.zeros((S, H_pad), wdt).at[:, :H].set(w1.astype(wdt))
    b1_p = jnp.zeros((1, H_pad), jnp.float32).at[0, :H].set(b1.astype(jnp.float32))
    w2t_p = jnp.zeros((A, H_pad), wdt).at[:, :H].set(w2.T.astype(wdt))
    b2_p = b2.astype(jnp.float32).reshape(A, 1)
    return w1_p, b1_p, w2t_p, b2_p


def policy_net_forward(states, params, action_bound, *, block_b=4096):
    """Fused forward pass.  states: (B, S) float; params from prepare_policy_params."""
    w1_p, b1_p, w2t_p, b2_p = params
    B, S = states.shape
    H_pad = w1_p.shape[1]
    A = w2t_p.shape[0]

    # Batch tile: lane axis of the transposed output, so it must be a multiple
    # of 128 (or equal to B for a single ragged tile).  Cap it so large batches
    # give >= 2 grid steps (spans both TensorCores on v7x).
    blk = max(_LANE, _LANE * (int(block_b) // _LANE))
    TB = min(blk, _LANE * pl.cdiv(pl.cdiv(B, 2), _LANE))
    if TB >= B:
        TB = B                                 # single ragged tile, full-dim block
    num_tiles = pl.cdiv(B, TB)

    kernel = functools.partial(_policy_kernel, action_bound=float(action_bound))

    wbytes = (w1_p.size + w2t_p.size) * w1_p.dtype.itemsize + (b1_p.size + b2_p.size) * 4
    cost = pl.CostEstimate(
        # Real (unpadded) batch/action dims; H_pad only inflates the tiny fc1 term.
        flops=2 * B * (S * H_pad + H_pad * A),
        transcendentals=B * A,
        bytes_accessed=B * S * states.dtype.itemsize + wbytes + B * A * 4,
    )

    out_t = pl.pallas_call(
        kernel,
        out_shape=jax.ShapeDtypeStruct((A, B), jnp.float32),
        grid=(num_tiles,),
        in_specs=[
            pl.BlockSpec((TB, S), lambda i: (i, 0)),        # states: tiled over batch
            pl.BlockSpec((S, H_pad), lambda i: (0, 0)),     # w1: resident
            pl.BlockSpec((1, H_pad), lambda i: (0, 0)),     # b1: resident
            pl.BlockSpec((A, H_pad), lambda i: (0, 0)),     # w2^T: resident
            pl.BlockSpec((A, 1), lambda i: (0, 0)),         # b2: resident
        ],
        out_specs=pl.BlockSpec((A, TB), lambda i: (0, i)),  # batch on lanes
        compiler_params=pltpu.CompilerParams(
            dimension_semantics=("parallel",),  # shard batch tiles across TCs on v7x
        ),
        cost_estimate=cost,
    )(states, w1_p, b1_p, w2t_p, b2_p)

    return out_t.T                                           # (A, B) -> (B, A)


def reference_forward(states, w1, b1, w2, b2, action_bound):
    h = jnp.maximum(states @ w1 + b1, 0.0)
    return jnp.tanh(h @ w2 + b2) * action_bound


if __name__ == "__main__":
    # Small shapes implied by the module: batch=8, state_dim=16, hidden=32, action_dim=4
    batch, state_dim, hidden_dim, action_dim = 8, 16, 32, 4
    action_bound = 2.0

    key = jax.random.PRNGKey(0)
    k_x, k_w1, k_b1, k_w2, k_b2, k_big = jax.random.split(key, 6)

    bound1 = 1.0 / jnp.sqrt(state_dim)
    bound2 = 1.0 / jnp.sqrt(hidden_dim)
    states = jax.random.normal(k_x, (batch, state_dim), dtype=jnp.float32)
    w1 = jax.random.uniform(k_w1, (state_dim, hidden_dim), jnp.float32, -bound1, bound1)
    b1 = jax.random.uniform(k_b1, (hidden_dim,), jnp.float32, -bound1, bound1)
    w2 = jax.random.uniform(k_w2, (hidden_dim, action_dim), jnp.float32, -bound2, bound2)
    b2 = jax.random.uniform(k_b2, (action_dim,), jnp.float32, -bound2, bound2)

    ref = reference_forward(states, w1, b1, w2, b2, action_bound)

    # f32 path (exact vs reference), single ragged tile.
    params_f32 = prepare_policy_params(w1, b1, w2, b2)
    out = jax.block_until_ready(policy_net_forward(states, params_f32, action_bound))
    assert out.shape == (batch, action_dim)
    assert jnp.allclose(out, ref, atol=1e-5, rtol=1e-5), "f32 mismatch vs reference"

    # Larger ragged batch exercising the multi-tile grid (2 tiles, ragged last tile).
    big_states = jax.random.normal(k_big, (300, state_dim), dtype=jnp.float32)
    big_ref = reference_forward(big_states, w1, b1, w2, b2, action_bound)
    big_out = jax.block_until_ready(
        policy_net_forward(big_states, params_f32, action_bound))
    assert big_out.shape == (300, action_dim)
    assert jnp.allclose(big_out, big_ref, atol=1e-5, rtol=1e-5), "tiled mismatch"

    # bf16 resident weights / in-kernel activation cast / f32 accumulation.
    params_bf16 = prepare_policy_params(w1, b1, w2, b2, weight_dtype=jnp.bfloat16)
    out_bf16 = jax.block_until_ready(
        policy_net_forward(states, params_bf16, action_bound))
    assert jnp.allclose(out_bf16, ref, atol=5e-2, rtol=5e-2), "bf16 mismatch"

    print("KERNEL_OK")
</pallas_src>

<mosaic_0001>
module attributes {stable_mosaic.version = 11 : i64} {
  func.func @_policy_kernel(%arg0: i32, %arg1: memref<8x16xf32, #tpu.memory_space<vmem>>, %arg2: memref<16x128xf32, #tpu.memory_space<vmem>>, %arg3: memref<1x128xf32, #tpu.memory_space<vmem>>, %arg4: memref<4x128xf32, #tpu.memory_space<vmem>>, %arg5: memref<4x1xf32, #tpu.memory_space<vmem>>, %arg6: memref<4x8xf32, #tpu.memory_space<vmem>>) attributes {dimension_semantics = [#tpu.dimension_semantics<parallel>], iteration_bounds = array<i64: 1>, scalar_prefetch = 0 : i64, scratch_operands = 0 : i64, tpu.core_type = #tpu.core_type<tc>, window_params = [{transform_indices = @transform_0, window_bounds = array<i64: 8, 16>}, {pipeline_mode = #tpu.pipeline_mode<synchronous>, transform_indices = @transform_1, window_bounds = array<i64: 16, 128>}, {pipeline_mode = #tpu.pipeline_mode<synchronous>, transform_indices = @transform_2, window_bounds = array<i64: 1, 128>}, {pipeline_mode = #tpu.pipeline_mode<synchronous>, transform_indices = @transform_3, window_bounds = array<i64: 4, 128>}, {pipeline_mode = #tpu.pipeline_mode<synchronous>, transform_indices = @transform_4, window_bounds = array<i64: 4, 1>}, {transform_indices = @transform_5, window_bounds = array<i64: 4, 8>}]} {
    %c0 = arith.constant 0 : index
    %c0_0 = arith.constant 0 : index
    %0 = vector.load %arg1[%c0, %c0_0] : memref<8x16xf32, #tpu.memory_space<vmem>>, vector<8x16xf32>
    %c0_1 = arith.constant 0 : index
    %c0_2 = arith.constant 0 : index
    %1 = vector.load %arg2[%c0_1, %c0_2] : memref<16x128xf32, #tpu.memory_space<vmem>>, vector<16x128xf32>
    %cst = arith.constant dense<0.000000e+00> : vector<8x128xf32>
    %2 = tpu.matmul %0, %1, %cst {dimension_numbers = #tpu.dot_dimension_numbers<[1], [0], [0], [1], [0, 0, 1, 1], [], []>} : vector<8x16xf32>, vector<16x128xf32>, vector<8x128xf32> -> vector<8x128xf32>
    %c0_3 = arith.constant 0 : index
    %c0_4 = arith.constant 0 : index
    %3 = vector.load %arg3[%c0_3, %c0_4] : memref<1x128xf32, #tpu.memory_space<vmem>>, vector<1x128xf32>
    %4 = vector.broadcast %3 : vector<1x128xf32> to vector<8x128xf32>
    %5 = arith.addf %2, %4 : vector<8x128xf32>
    %cst_5 = arith.constant 0.000000e+00 : f32
    %6 = vector.broadcast %cst_5 : f32 to vector<8x128xf32>
    %7 = arith.maximumf %5, %6 : vector<8x128xf32>
    %c0_6 = arith.constant 0 : index
    %c0_7 = arith.constant 0 : index
    %8 = vector.load %arg4[%c0_6, %c0_7] : memref<4x128xf32, #tpu.memory_space<vmem>>, vector<4x128xf32>
    %cst_8 = arith.constant dense<0.000000e+00> : vector<4x8xf32>
    %9 = tpu.matmul %8, %7, %cst_8 {dimension_numbers = #tpu.dot_dimension_numbers<[1], [1], [0], [0], [0, 0, 1, 0], [], []>} : vector<4x128xf32>, vector<8x128xf32>, vector<4x8xf32> -> vector<4x8xf32>
    %c0_9 = arith.constant 0 : index
    %c0_10 = arith.constant 0 : index
    %10 = vector.load %arg5[%c0_9, %c0_10] : memref<4x1xf32, #tpu.memory_space<vmem>>, vector<4x1xf32>
    %11 = vector.broadcast %10 : vector<4x1xf32> to vector<4x8xf32>
    %12 = arith.addf %9, %11 : vector<4x8xf32>
    %13 = math.tanh %12 : vector<4x8xf32>
    %cst_11 = arith.constant 2.000000e+00 : f32
    %14 = vector.broadcast %cst_11 : f32 to vector<4x8xf32>
    %15 = arith.mulf %13, %14 : vector<4x8xf32>
    %c0_12 = arith.constant 0 : index
    %c0_13 = arith.constant 0 : index
    %16 = vector.load %arg6[%c0_12, %c0_13] : memref<4x8xf32, #tpu.memory_space<vmem>>, vector<4x8xf32>
    tpu.vector_store %arg6[%c0_12, %c0_13], %15 {strides = array<i32>} : memref<4x8xf32, #tpu.memory_space<vmem>>, vector<4x8xf32>,
    return
  }
  func.func @transform_0(%arg0: i32) -> (i32, i32) {
    %c0_i32 = arith.constant 0 : i32
    %c0_i32_0 = arith.constant 0 : i32
    return %arg0, %c0_i32 : i32, i32
  }
  func.func @transform_1(%arg0: i32) -> (i32, i32) {
    %c0_i32 = arith.constant 0 : i32
    %c0_i32_0 = arith.constant 0 : i32
    %c0_i32_1 = arith.constant 0 : i32
    return %c0_i32, %c0_i32_0 : i32, i32
  }
  func.func @transform_2(%arg0: i32) -> (i32, i32) {
    %c0_i32 = arith.constant 0 : i32
    %c0_i32_0 = arith.constant 0 : i32
    %c0_i32_1 = arith.constant 0 : i32
    return %c0_i32, %c0_i32_0 : i32, i32
  }
  func.func @transform_3(%arg0: i32) -> (i32, i32) {
    %c0_i32 = arith.constant 0 : i32
    %c0_i32_0 = arith.constant 0 : i32
    %c0_i32_1 = arith.constant 0 : i32
    return %c0_i32, %c0_i32_0 : i32, i32
  }
  func.func @transform_4(%arg0: i32) -> (i32, i32) {
    %c0_i32 = arith.constant 0 : i32
    %c0_i32_0 = arith.constant 0 : i32
    %c0_i32_1 = arith.constant 0 : i32
    return %c0_i32, %c0_i32_0 : i32, i32
  }
  func.func @transform_5(%arg0: i32) -> (i32, i32) {
    %c0_i32 = arith.constant 0 : i32
    %c0_i32_0 = arith.constant 0 : i32
    return %c0_i32, %arg0 : i32, i32
  }
}

</mosaic_0001>

<llo_original>
// kernel: tpu_custom_call.1
$region0: #{tpu_custom_call.1}
  #allocation0 [shape = 'u32[]', space=smem, size = 0x4, offset = 0x4, fixed_abs, tag = 'smem constant byte address 0x4 - core index']
  #allocation1 [shape = 'u32[144,128]{1,0:T(1,128)}', space=vmem, size = 0x12000, scoped, tag = 'internal scratch']
  %s0 = inlined_call_operand.hbm [shape: f32[8,16], index: 0, kind: input, shape index: {}]
  %s1 = inlined_call_operand.hbm [shape: f32[16,128], index: 1, kind: input, shape index: {}]
  %s2 = inlined_call_operand.vmem [shape: f32[1,128], index: 2, kind: input, shape index: {}]
  %s3 = inlined_call_operand.vmem [shape: f32[4,128], index: 3, kind: input, shape index: {}]
  %s4 = inlined_call_operand.vmem [shape: f32[4,1], index: 4, kind: input, shape index: {}]
  %s5 = inlined_call_operand.hbm [shape: f32[4,8], index: 5, kind: output, shape index: {}]
  %s6 = sld [smem:[#allocation0]]
  $region38: #{tpu_custom_call.1} parent=0
    _
  %s8 = ssub.s32 1, %s6
  %s9 = scalar_select 0, %s8, %s6
  $region1: #{tpu_custom_call.1} parent=0
    #allocation2 [shape = 'u8[4096]{0}', space=vmem, size = 0x1000, scoped, tag = 'input window, operand 0, single buffered']
    #allocation3 [shape = 's32[1]{0}', space=sflag, size = 0x4, scoped, tag = 'scoped memory for tpu_custom_call.1']
    #allocation4 [shape = 's32[1]{0}', space=sflag, size = 0x4, scoped, tag = 'scoped memory for tpu_custom_call.1']
    #allocation5 [shape = 'u8[8192]{0}', space=vmem, size = 0x2000, scoped, tag = 'input window, operand 1, single buffered']
    #allocation6 [shape = 's32[1]{0}', space=sflag, size = 0x4, scoped, tag = 'scoped memory for tpu_custom_call.1']
    #allocation7 [shape = 'u8[2048]{0}', space=vmem, size = 0x800, scoped, tag = 'output window, operand 0, single buffered']
    %10 = vsyncpa [#allocation3], 0
    %11 = vsyncpa [#allocation6], 0
    %12 = vsyncpa [#allocation4], 0
    // Predicated region
    $region2: #{tpu_custom_call.1} parent=1 // pred_check
      _
    $region3: #{tpu_custom_call.1} parent=1 // pred_check_branch
      %14 = sbr.rel (0) target = $region5
    $region4: #{tpu_custom_call.1} parent=1 // pred_region
      %s16 = ssub.s32 128, 128
      %17 = vsyncadd [#allocation3], %s16
      %s19 = sshll.u32 [#allocation2], 4
      %s20 = int_to_ptr.vmem [resolvable:$true] %s19
      %22 = dma.hbm_to_vmem [thread:$0]  %s0, 128, %s20, [#allocation3]
    $region5: #{tpu_custom_call.1} parent=1 // pred_fallthru
      _
    // Predicated region
    $region6: #{tpu_custom_call.1} parent=1 // pred_check
      _
    $region7: #{tpu_custom_call.1} parent=1 // pred_check_branch
      %24 = sbr.rel (0) target = $region9
    $region8: #{tpu_custom_call.1} parent=1 // pred_region
      %s26 = ssub.s32 256, 256
      %27 = vsyncadd [#allocation6], %s26
      %s28 = sshll.u32 [#allocation5], 4
      %s29 = int_to_ptr.vmem [resolvable:$true] %s28
      %34 = dma.hbm_to_vmem [thread:$0]  %s1, 256, %s29, [#allocation6], 128, 128, 8
    $region9: #{tpu_custom_call.1} parent=1 // pred_fallthru
      _
    // Predicated region
    $region10: #{tpu_custom_call.1} parent=1 // pred_check
      _
    $region11: #{tpu_custom_call.1} parent=1 // pred_check_branch
      %36 = sbr.rel (0) target = $region13
    $region12: #{tpu_custom_call.1} parent=1 // pred_region
      _
    $region13: #{tpu_custom_call.1} parent=1 // pred_fallthru
      _
    // Predicated region
    $region14: #{tpu_custom_call.1} parent=1 // pred_check
      _
    $region15: #{tpu_custom_call.1} parent=1 // pred_check_branch
      %38 = sbr.rel (0) target = $region17
    $region16: #{tpu_custom_call.1} parent=1 // pred_region
      _
    $region17: #{tpu_custom_call.1} parent=1 // pred_fallthru
      _
    // Predicated region
    $region18: #{tpu_custom_call.1} parent=1 // pred_check
      _
    $region19: #{tpu_custom_call.1} parent=1 // pred_check_branch
      %40 = sbr.rel (0) target = $region21
    $region20: #{tpu_custom_call.1} parent=1 // pred_region
      _
    $region21: #{tpu_custom_call.1} parent=1 // pred_fallthru
      _
    // Predicated region
    $region22: #{tpu_custom_call.1} parent=1 // pred_check
      _
    $region23: #{tpu_custom_call.1} parent=1 // pred_check_branch
      %42 = sbr.rel (0) target = $region25
    $region24: #{tpu_custom_call.1} parent=1 // pred_region
      %43 = dma.done [#allocation3], 128
    $region25: #{tpu_custom_call.1} parent=1 // pred_fallthru
      _
    // Predicated region
    $region26: #{tpu_custom_call.1} parent=1 // pred_check
      _
    $region27: #{tpu_custom_call.1} parent=1 // pred_check_branch
      %45 = sbr.rel (0) target = $region29
    $region28: #{tpu_custom_call.1} parent=1 // pred_region
      %46 = dma.done [#allocation6], 256
    $region29: #{tpu_custom_call.1} parent=1 // pred_fallthru
      _
    %v47 = vld [vmem:[#allocation2] sm:$0xff]
    %v48 = vld [vmem:[#allocation5] sm:$0xff]
    %v49 = vld [vmem:[#allocation5 + $0x8] sm:$0xff]
    %v50 = vld [vmem:[%s2] sm:$0x1]
    %v52 = vlaneseq
    %v53 = vshrl.u32 %v52, 7
    %v54 = vsub.s32 0, %v53
    %v55 = vrot.slane %v50, %v54
    %vm57 = vcmask 130048
    %v59 = vsel %vm57, %v47, 0
    %61 = vmatprep.subr.mxu0 0.0
    %62 = vmatpush1.msra.mxu0 %v48
    %63 = vmatprep.subr.mxu0 0.0
    %64 = vmatpush1.msra.mxu0 %v49
    %65 = vmatprep.subr.mxu0 0.0
    %66 = vmatpush1.msra.mxu0 0.0
    %67 = vmatprep.subr.mxu0 0.0
    %68 = vmatpush1.msra.mxu0 0.0
    %69 = vmatprep.subr.mxu0 0.0
    %70 = vmatpush1.msra.mxu0 0.0
    %71 = vmatprep.subr.mxu0 0.0
    %72 = vmatpush1.msra.mxu0 0.0
    %73 = vmatprep.subr.mxu0 0.0
    %74 = vmatpush1.msra.mxu0 0.0
    %75 = vmatprep.subr.mxu0 0.0
    %76 = vmatpush1.msra.mxu0 0.0
    %77 = vmatprep.subr.mxu0 0.0
    %78 = vmatpush1.msra.mxu0 0.0
    %79 = vmatprep.subr.mxu0 0.0
    %80 = vmatpush1.msra.mxu0 0.0
    %81 = vmatprep.subr.mxu0 0.0
    %82 = vmatpush1.msra.mxu0 0.0
    %83 = vmatprep.subr.mxu0 0.0
    %84 = vmatpush1.msra.mxu0 0.0
    %85 = vmatprep.subr.mxu0 0.0
    %86 = vmatpush1.msra.mxu0 0.0
    %87 = vmatprep.subr.mxu0 0.0
    %88 = vmatpush1.msra.mxu0 0.0
    %89 = vmatprep.subr.mxu0 0.0
    %90 = vmatpush1.msra.mxu0 0.0
    %91 = vmatprep.subr.mxu0 0.0
    %92 = vmatpush1.msra.mxu0 0.0
    %93 = vmatprep.subr.mxu0 0.0
    %94 = vmatpush1.msra.mxu0 0.0
    %95 = vmatprep.subr.mxu0 0.0
    %96 = vmatpush1.msra.mxu0 0.0
    %97 = vmatprep.subr.mxu0 0.0
    %98 = vmatpush1.msra.mxu0 0.0
    %99 = vmatprep.subr.mxu0 0.0
    %100 = vmatpush1.msra.mxu0 0.0
    %101 = vmatprep.subr.mxu0 0.0
    %102 = vmatpush1.msra.mxu0 0.0
    %103 = vmatprep.subr.mxu0 0.0
    %104 = vmatpush1.msra.mxu0 0.0
    %105 = vmatprep.subr.mxu0 0.0
    %106 = vmatpush1.msra.mxu0 0.0
    %107 = vmatprep.subr.mxu0 0.0
    %108 = vmatpush1.msra.mxu0 0.0
    %109 = vmatprep.subr.mxu0 0.0
    %110 = vmatpush1.msra.mxu0 0.0
    %111 = vmatprep.subr.mxu0 0.0
    %112 = vmatpush1.msra.mxu0 0.0
    %113 = vmatprep.subr.mxu0 0.0
    %114 = vmatpush1.msra.mxu0 0.0
    %115 = vmatprep.subr.mxu0 0.0
    %116 = vmatpush1.msra.mxu0 0.0
    %117 = vmatprep.subr.mxu0 0.0
    %118 = vmatpush1.msra.mxu0 0.0
    %119 = vmatprep.subr.mxu0 0.0
    %120 = vmatpush1.msra.mxu0 0.0
    %121 = vmatprep.subr.mxu0 0.0
    %122 = vmatpush1.msra.mxu0 0.0
    %123 = vmatprep.subr.mxu0 0.0
    %124 = vmatpush1.msra.mxu0 0.0
    %125 = vmatprep.mubr.f32.mxu0 0.0
    %126 = vmatmul.mubr.f32.gmra.mrb[0].mxu0 %v59
    %v127 = vpop.f32.mrb[0].mxu0
    %v128 = vadd.f32 %v55, %v127
    %v129 = vpop.f32.mrb[0].mxu0
    %130 = vdwg.mxu0
    %v131 = vmax.f32 %v128, 0.0
    %v132 = vld [vmem:[%s3] sm:$0xf]
    %v133 = vld [vmem:[%s4] sm:$0xf]
    %135 = vset.pattern.permute.xlu0 0
    %136 = vperm.xlu0 %135, %v133
    %v137 = vpop.permute.xlu0 %136
    %139 = vmatprep.subr.mxu0 0.0
    %140 = vmatpush1.xpose.msra.mxu0 %v131
    %141 = vmatprep.subr.mxu0 0.0
    %142 = vmatpush1.xpose.msra.mxu0 0.0
    %143 = vmatprep.subr.mxu0 0.0
    %144 = vmatpush1.xpose.msra.mxu0 0.0
    %145 = vmatprep.subr.mxu0 0.0
    %146 = vmatpush1.xpose.msra.mxu0 0.0
    %147 = vmatprep.subr.mxu0 0.0
    %148 = vmatpush1.xpose.msra.mxu0 0.0
    %149 = vmatprep.subr.mxu0 0.0
    %150 = vmatpush1.xpose.msra.mxu0 0.0
    %151 = vmatprep.subr.mxu0 0.0
    %152 = vmatpush1.xpose.msra.mxu0 0.0
    %153 = vmatprep.subr.mxu0 0.0
    %154 = vmatpush1.xpose.msra.mxu0 0.0
    %155 = vmatprep.subr.mxu0 0.0
    %156 = vmatpush1.xpose.msra.mxu0 0.0
    %157 = vmatprep.subr.mxu0 0.0
    %158 = vmatpush1.xpose.msra.mxu0 0.0
    %159 = vmatprep.subr.mxu0 0.0
    %160 = vmatpush1.xpose.msra.mxu0 0.0
    %161 = vmatprep.subr.mxu0 0.0
    %162 = vmatpush1.xpose.msra.mxu0 0.0
    %163 = vmatprep.subr.mxu0 0.0
    %164 = vmatpush1.xpose.msra.mxu0 0.0
    %165 = vmatprep.subr.mxu0 0.0
    %166 = vmatpush1.xpose.msra.mxu0 0.0
    %167 = vmatprep.subr.mxu0 0.0
    %168 = vmatpush1.xpose.msra.mxu0 0.0
    %169 = vmatprep.subr.mxu0 0.0
    %170 = vmatpush1.xpose.msra.mxu0 0.0
    %171 = vmatprep.subr.mxu0 0.0
    %172 = vmatpush1.xpose.msra.mxu0 0.0
    %173 = vmatprep.subr.mxu0 0.0
    %174 = vmatpush1.xpose.msra.mxu0 0.0
    %175 = vmatprep.subr.mxu0 0.0
    %176 = vmatpush1.xpose.msra.mxu0 0.0
    %177 = vmatprep.subr.mxu0 0.0
    %178 = vmatpush1.xpose.msra.mxu0 0.0
    %179 = vmatprep.subr.mxu0 0.0
    %180 = vmatpush1.xpose.msra.mxu0 0.0
    %181 = vmatprep.subr.mxu0 0.0
    %182 = vmatpush1.xpose.msra.mxu0 0.0
    %183 = vmatprep.subr.mxu0 0.0
    %184 = vmatpush1.xpose.msra.mxu0 0.0
    %185 = vmatprep.subr.mxu0 0.0
    %186 = vmatpush1.xpose.msra.mxu0 0.0
    %187 = vmatprep.subr.mxu0 0.0
    %188 = vmatpush1.xpose.msra.mxu0 0.0
    %189 = vmatprep.subr.mxu0 0.0
    %190 = vmatpush1.xpose.msra.mxu0 0.0
    %191 = vmatprep.subr.mxu0 0.0
    %192 = vmatpush1.xpose.msra.mxu0 0.0
    %193 = vmatprep.subr.mxu0 0.0
    %194 = vmatpush1.xpose.msra.mxu0 0.0
    %195 = vmatprep.subr.mxu0 0.0
    %196 = vmatpush1.xpose.msra.mxu0 0.0
    %197 = vmatprep.subr.mxu0 0.0
    %198 = vmatpush1.xpose.msra.mxu0 0.0
    %199 = vmatprep.subr.mxu0 0.0
    %200 = vmatpush1.xpose.msra.mxu0 0.0
    %201 = vmatprep.subr.mxu0 0.0
    %202 = vmatpush1.xpose.msra.mxu0 0.0
    %203 = vmatprep.mubr.f32.mxu0 0.0
    %204 = vmatmul.mubr.f32.gmra.mrb[0].mxu0 %v132
    %v205 = vpop.f32.mrb[0].mxu0
    %v206 = vadd.f32 %v137, %v205
    %v207 = vpop.f32.mrb[0].mxu0
    %208 = vdwg.mxu0
    %v209 = vtanh.pop %v206
    %v210 = vmul.f32 %v209, 2.0
    %vm211 = vcmask 60416
    %212 = vst.msk [vmem:[#allocation7] sm:$0xf] %vm211, %v210
    // Predicated region
    $region30: #{tpu_custom_call.1} parent=1 // pred_check
      _
    $region31: #{tpu_custom_call.1} parent=1 // pred_check_branch
      %214 = sbr.rel (0) target = $region33
    $region32: #{tpu_custom_call.1} parent=1 // pred_region
      %s216 = ssub.s32 64, 64
      %217 = vsyncadd [#allocation4], %s216
      %s219 = sshll.u32 [#allocation7], 4
      %s220 = int_to_ptr.vmem [resolvable:$true] %s219
      %222 = dma.vmem_to_hbm [thread:$0]  %s220, 64, %s5, [#allocation4]
    $region33: #{tpu_custom_call.1} parent=1 // pred_fallthru
      _
    // Predicated region
    $region34: #{tpu_custom_call.1} parent=1 // pred_check
      _
    $region35: #{tpu_custom_call.1} parent=1 // pred_check_branch
      %224 = sbr.rel (0) target = $region37
    $region36: #{tpu_custom_call.1} parent=1 // pred_region
      %225 = dma.done [#allocation4], 64
    $region37: #{tpu_custom_call.1} parent=1 // pred_fallthru
      _
    %226 = vsyncpa [#allocation3], 1
    %227 = vsyncpa [#allocation6], 1
    %228 = vsyncpa [#allocation4], 1

</llo_original>
